<compile_context>
chip_gen: v5e
topology: v5e:2x2
jax: 0.10.0
libtpu: 0.0.40
codegen_flags: <defaults>
</compile_context>

<pallas_src>
import math
import jax
import jax.numpy as jnp
from jax.experimental import pallas as pl
from jax.experimental.pallas import tpu as pltpu


def _round_up(x, m):
    return ((x + m - 1) // m) * m


def _make_kernel(matmul_precision):
    def kernel(x_ref, w1_ref, b1_ref, wa_ref, ba_ref, wc_ref, bc_ref,
               logits_ref, value_ref):
        mm_dtype = w1_ref.dtype
        # Hidden layer: (TB, D) @ (D, 128) -> f32 accumulate; bias + ReLU in f32 on VPU.
        h = jnp.dot(x_ref[...], w1_ref[...],
                    preferred_element_type=jnp.float32,
                    precision=matmul_precision)
        h = jnp.maximum(h + b1_ref[...], 0.0)
        h = h.astype(mm_dtype)  # no-op for the f32 path; bf16 cast feeds the MXU only
        # Actor head: (TB, 128) @ (128, A) + (1, A)
        logits_ref[...] = (jnp.dot(h, wa_ref[...],
                                   preferred_element_type=jnp.float32,
                                   precision=matmul_precision)
                           + ba_ref[...]).astype(logits_ref.dtype)
        # Critic head: (TB, 128) @ (128, 1) + (1, 1)
        value_ref[...] = (jnp.dot(h, wc_ref[...],
                                  preferred_element_type=jnp.float32,
                                  precision=matmul_precision)
                          + bc_ref[...]).astype(value_ref.dtype)
    return kernel


def actor_critic_forward(x, params, *, tile_b=2048, compute_dtype=jnp.float32):
    """x: (B, input_dim).  params: transposed weights + biases (see init_params).
    Returns (logits (B, A) f32, value (B, 1) f32)."""
    B, D = x.shape
    H = params["w1"].shape[1]      # 128
    A = params["wa"].shape[1]      # output_dim

    compute_dtype = jnp.dtype(compute_dtype)
    is_f32 = compute_dtype == jnp.dtype(jnp.float32)
    align = 8 if is_f32 else 16    # bf16 packs 2 rows per sublane

    # Cast MXU operands only; biases (VPU work) stay f32; outputs are f32.
    xk = x.astype(compute_dtype)
    w1 = params["w1"].astype(compute_dtype)
    wa = params["wa"].astype(compute_dtype)
    wc = params["wc"].astype(compute_dtype)
    b1 = params["b1"].astype(jnp.float32)
    ba = params["ba"].astype(jnp.float32)
    bc = params["bc"].astype(jnp.float32)

    # --- Batch tiling: big tiles for big B; >=2 (up to 4) steps for medium B so the
    # "parallel" grid axis can shard across v7x's two TensorCores. ---
    if B > tile_b:
        tb = tile_b
    else:
        n_splits = 4 if B >= 256 else (2 if B >= 128 else 1)
        tb = max(align, _round_up(-(-B // n_splits), align))
        tb = min(tb, tile_b)
    Bp = _round_up(B, tb)
    if Bp != B:
        xk = jnp.pad(xk, ((0, Bp - B), (0, 0)))
    grid = (Bp // tb,)

    in_specs = [
        pl.BlockSpec((tb, D), lambda i: (i, 0)),   # x tile
        pl.BlockSpec((D, H), lambda i: (0, 0)),    # w1 (grid-invariant)
        pl.BlockSpec((1, H), lambda i: (0, 0)),    # b1
        pl.BlockSpec((H, A), lambda i: (0, 0)),    # actor weight
        pl.BlockSpec((1, A), lambda i: (0, 0)),    # actor bias
        pl.BlockSpec((H, 1), lambda i: (0, 0)),    # critic weight
        pl.BlockSpec((1, 1), lambda i: (0, 0)),    # critic bias
    ]
    out_specs = [
        pl.BlockSpec((tb, A), lambda i: (i, 0)),   # logits (narrow, full last dim)
        pl.BlockSpec((tb, 1), lambda i: (i, 0)),   # value
    ]
    out_shape = (jax.ShapeDtypeStruct((Bp, A), jnp.float32),
                 jax.ShapeDtypeStruct((Bp, 1), jnp.float32))

    # --- VMEM budget from the actual tile footprint; cap below physical VMEM. ---
    bpe = compute_dtype.itemsize
    est = (2 * tb * D * bpe                     # x tile, double-buffered
           + 2 * tb * (A + 1) * 4               # logits + value tiles, double-buffered
           + 2 * (D * H + H * A + H) * bpe      # weights (worst-case double-buffered)
           + 2 * (H + A + 1) * 4                # biases
           + tb * H * 4)                        # hidden temp (f32)
    try:
        phys_vmem = pltpu.get_tpu_info().vmem_capacity_bytes
    except Exception:
        phys_vmem = 64 << 20                    # conservative (v7x)
    cap = min((phys_vmem * 3) // 4, 96 << 20)   # ~48 MiB on v7x, higher on v5e/v6e
    vmem_limit = int(min(max(2 * est + (4 << 20), 16 << 20), cap))

    cost = pl.CostEstimate(
        flops=int(2 * Bp * (D * H + H * (A + 1))),
        transcendentals=0,
        bytes_accessed=int(Bp * D * bpe + (D * H + H * (A + 1)) * bpe
                           + (H + A + 1) * 4 + Bp * (A + 1) * 4),
    )

    kernel = _make_kernel(jax.lax.Precision.HIGHEST if is_f32 else None)

    logits, value = pl.pallas_call(
        kernel,
        out_shape=out_shape,
        grid_spec=pltpu.PrefetchScalarGridSpec(
            num_scalar_prefetch=0,
            grid=grid,
            in_specs=in_specs,
            out_specs=out_specs,
        ),
        compiler_params=pltpu.CompilerParams(
            dimension_semantics=("parallel",),   # batch tiles shard across v7x's 2 TCs
            vmem_limit_bytes=vmem_limit,
        ),
        cost_estimate=cost,
    )(xk, w1, b1, wa, ba, wc, bc)

    if Bp != B:
        logits = logits[:B]
        value = value[:B]
    return logits, value


def init_params(key, input_dim, output_dim, hidden=128):
    """Deterministic init mirroring nn.Linear default U(-1/sqrt(fan_in), +1/sqrt(fan_in)).
    Weights stored as (in_features, out_features) = PyTorch weight.T."""
    k1, k2, k3, k4, k5, k6 = jax.random.split(key, 6)

    def u(k, shape, fan_in):
        bound = 1.0 / math.sqrt(fan_in)
        return jax.random.uniform(k, shape, jnp.float32, -bound, bound)

    return {
        "w1": u(k1, (input_dim, hidden), input_dim),
        "b1": u(k2, (1, hidden), input_dim),
        "wa": u(k3, (hidden, output_dim), hidden),
        "ba": u(k4, (1, output_dim), hidden),
        "wc": u(k5, (hidden, 1), hidden),
        "bc": u(k6, (1, 1), hidden),
    }


def reference_forward(x, params):
    p = jax.lax.Precision.HIGHEST
    h = jnp.maximum(jnp.dot(x, params["w1"], precision=p) + params["b1"], 0.0)
    logits = jnp.dot(h, params["wa"], precision=p) + params["ba"]
    value = jnp.dot(h, params["wc"], precision=p) + params["bc"]
    return logits, value


if __name__ == "__main__":
    B, INPUT_DIM, OUTPUT_DIM = 16, 32, 8

    key = jax.random.PRNGKey(0)
    kx, kp = jax.random.split(key)
    x = jax.random.normal(kx, (B, INPUT_DIM), dtype=jnp.float32)
    params = init_params(kp, INPUT_DIM, OUTPUT_DIM)

    # 1) Small-batch fp32 path (single tile).
    logits, value = actor_critic_forward(x, params)
    logits = jax.block_until_ready(logits)
    value = jax.block_until_ready(value)
    ref_logits, ref_value = reference_forward(x, params)
    assert logits.shape == (B, OUTPUT_DIM) and value.shape == (B, 1)
    assert jnp.allclose(logits, ref_logits, atol=1e-5, rtol=1e-5)
    assert jnp.allclose(value, ref_value, atol=1e-5, rtol=1e-5)

    # 2) Multi-tile / non-multiple batch (padding + cdiv grid, tb=tile_b).
    B2 = 300
    x2 = jax.random.normal(kx, (B2, INPUT_DIM), dtype=jnp.float32)
    l2, v2 = actor_critic_forward(x2, params, tile_b=128)
    l2 = jax.block_until_ready(l2)
    rl2, rv2 = reference_forward(x2, params)
    assert l2.shape == (B2, OUTPUT_DIM) and v2.shape == (B2, 1)
    assert jnp.allclose(l2, rl2, atol=1e-5, rtol=1e-5)
    assert jnp.allclose(v2, rv2, atol=1e-5, rtol=1e-5)

    # 3) Medium batch: auto-split into >=2 tiles (megacore-aware path).
    B3 = 160
    x3 = jax.random.normal(kx, (B3, INPUT_DIM), dtype=jnp.float32)
    l3, v3 = actor_critic_forward(x3, params)
    l3 = jax.block_until_ready(l3)
    rl3, rv3 = reference_forward(x3, params)
    assert jnp.allclose(l3, rl3, atol=1e-5, rtol=1e-5)
    assert jnp.allclose(v3, rv3, atol=1e-5, rtol=1e-5)

    # 4) bf16 matmul-operand path (f32 accumulate / bias / ReLU), loose tolerance.
    lb, vb = actor_critic_forward(x2, params, tile_b=128, compute_dtype=jnp.bfloat16)
    lb = jax.block_until_ready(lb)
    assert jnp.allclose(lb, rl2, atol=1e-1, rtol=1e-1)
    assert jnp.allclose(vb, rv2, atol=1e-1, rtol=1e-1)

    print("KERNEL_OK")
</pallas_src>

<mosaic_0001>
module attributes {stable_mosaic.version = 11 : i64} {
  func.func @kernel(%arg0: i32, %arg1: memref<16x32xf32, #tpu.memory_space<vmem>>, %arg2: memref<32x128xf32, #tpu.memory_space<vmem>>, %arg3: memref<1x128xf32, #tpu.memory_space<vmem>>, %arg4: memref<128x8xf32, #tpu.memory_space<vmem>>, %arg5: memref<1x8xf32, #tpu.memory_space<vmem>>, %arg6: memref<128x1xf32, #tpu.memory_space<vmem>>, %arg7: memref<1x1xf32, #tpu.memory_space<vmem>>, %arg8: memref<16x8xf32, #tpu.memory_space<vmem>>, %arg9: memref<16x1xf32, #tpu.memory_space<vmem>>) attributes {dimension_semantics = [#tpu.dimension_semantics<parallel>], iteration_bounds = array<i64: 1>, scalar_prefetch = 0 : i64, scratch_operands = 0 : i64, tpu.core_type = #tpu.core_type<tc>, window_params = [{transform_indices = @transform_0, window_bounds = array<i64: 16, 32>}, {pipeline_mode = #tpu.pipeline_mode<synchronous>, transform_indices = @transform_1, window_bounds = array<i64: 32, 128>}, {pipeline_mode = #tpu.pipeline_mode<synchronous>, transform_indices = @transform_2, window_bounds = array<i64: 1, 128>}, {pipeline_mode = #tpu.pipeline_mode<synchronous>, transform_indices = @transform_3, window_bounds = array<i64: 128, 8>}, {pipeline_mode = #tpu.pipeline_mode<synchronous>, transform_indices = @transform_4, window_bounds = array<i64: 1, 8>}, {pipeline_mode = #tpu.pipeline_mode<synchronous>, transform_indices = @transform_5, window_bounds = array<i64: 128, 1>}, {pipeline_mode = #tpu.pipeline_mode<synchronous>, transform_indices = @transform_6, window_bounds = array<i64: 1, 1>}, {transform_indices = @transform_7, window_bounds = array<i64: 16, 8>}, {transform_indices = @transform_8, window_bounds = array<i64: 16, 1>}]} {
    %c0 = arith.constant 0 : index
    %c0_0 = arith.constant 0 : index
    %0 = vector.load %arg1[%c0, %c0_0] : memref<16x32xf32, #tpu.memory_space<vmem>>, vector<16x32xf32>
    %c0_1 = arith.constant 0 : index
    %c0_2 = arith.constant 0 : index
    %1 = vector.load %arg2[%c0_1, %c0_2] : memref<32x128xf32, #tpu.memory_space<vmem>>, vector<32x128xf32>
    %cst = arith.constant dense<0.000000e+00> : vector<16x128xf32>
    %2 = tpu.matmul %0, %1, %cst {dimension_numbers = #tpu.dot_dimension_numbers<[1], [0], [0], [1], [0, 0, 1, 1], [], []>, precision = #tpu.contract_precision<fp32>} : vector<16x32xf32>, vector<32x128xf32>, vector<16x128xf32> -> vector<16x128xf32>
    %c0_3 = arith.constant 0 : index
    %c0_4 = arith.constant 0 : index
    %3 = vector.load %arg3[%c0_3, %c0_4] : memref<1x128xf32, #tpu.memory_space<vmem>>, vector<1x128xf32>
    %4 = vector.broadcast %3 : vector<1x128xf32> to vector<16x128xf32>
    %5 = arith.addf %2, %4 : vector<16x128xf32>
    %cst_5 = arith.constant 0.000000e+00 : f32
    %6 = vector.broadcast %cst_5 : f32 to vector<16x128xf32>
    %7 = arith.maximumf %5, %6 : vector<16x128xf32>
    %c0_6 = arith.constant 0 : index
    %c0_7 = arith.constant 0 : index
    %8 = vector.load %arg4[%c0_6, %c0_7] : memref<128x8xf32, #tpu.memory_space<vmem>>, vector<128x8xf32>
    %cst_8 = arith.constant dense<0.000000e+00> : vector<16x8xf32>
    %9 = tpu.matmul %7, %8, %cst_8 {dimension_numbers = #tpu.dot_dimension_numbers<[1], [0], [0], [1], [0, 0, 1, 1], [], []>, precision = #tpu.contract_precision<fp32>} : vector<16x128xf32>, vector<128x8xf32>, vector<16x8xf32> -> vector<16x8xf32>
    %c0_9 = arith.constant 0 : index
    %c0_10 = arith.constant 0 : index
    %10 = vector.load %arg5[%c0_9, %c0_10] : memref<1x8xf32, #tpu.memory_space<vmem>>, vector<1x8xf32>
    %11 = vector.broadcast %10 : vector<1x8xf32> to vector<16x8xf32>
    %12 = arith.addf %9, %11 : vector<16x8xf32>
    %c0_11 = arith.constant 0 : index
    %c0_12 = arith.constant 0 : index
    %13 = vector.load %arg8[%c0_11, %c0_12] : memref<16x8xf32, #tpu.memory_space<vmem>>, vector<16x8xf32>
    tpu.vector_store %arg8[%c0_11, %c0_12], %12 {strides = array<i32>} : memref<16x8xf32, #tpu.memory_space<vmem>>, vector<16x8xf32>,
    %c0_13 = arith.constant 0 : index
    %c0_14 = arith.constant 0 : index
    %14 = vector.load %arg6[%c0_13, %c0_14] : memref<128x1xf32, #tpu.memory_space<vmem>>, vector<128x1xf32>
    %cst_15 = arith.constant dense<0.000000e+00> : vector<16x1xf32>
    %15 = tpu.matmul %7, %14, %cst_15 {dimension_numbers = #tpu.dot_dimension_numbers<[1], [0], [0], [1], [0, 0, 1, 1], [], []>, precision = #tpu.contract_precision<fp32>} : vector<16x128xf32>, vector<128x1xf32>, vector<16x1xf32> -> vector<16x1xf32>
    %c0_16 = arith.constant 0 : index
    %c0_17 = arith.constant 0 : index
    %16 = vector.load %arg7[%c0_16, %c0_17] : memref<1x1xf32, #tpu.memory_space<vmem>>, vector<1x1xf32>
    %17 = vector.broadcast %16 : vector<1x1xf32> to vector<16x1xf32>
    %18 = arith.addf %15, %17 : vector<16x1xf32>
    %c0_18 = arith.constant 0 : index
    %c0_19 = arith.constant 0 : index
    %19 = vector.load %arg9[%c0_18, %c0_19] : memref<16x1xf32, #tpu.memory_space<vmem>>, vector<16x1xf32>
    tpu.vector_store %arg9[%c0_18, %c0_19], %18 {strides = array<i32>} : memref<16x1xf32, #tpu.memory_space<vmem>>, vector<16x1xf32>,
    return
  }
  func.func @transform_0(%arg0: i32) -> (i32, i32) {
    %c0_i32 = arith.constant 0 : i32
    %c0_i32_0 = arith.constant 0 : i32
    return %arg0, %c0_i32 : i32, i32
  }
  func.func @transform_1(%arg0: i32) -> (i32, i32) {
    %c0_i32 = arith.constant 0 : i32
    %c0_i32_0 = arith.constant 0 : i32
    %c0_i32_1 = arith.constant 0 : i32
    return %c0_i32, %c0_i32_0 : i32, i32
  }
  func.func @transform_2(%arg0: i32) -> (i32, i32) {
    %c0_i32 = arith.constant 0 : i32
    %c0_i32_0 = arith.constant 0 : i32
    %c0_i32_1 = arith.constant 0 : i32
    return %c0_i32, %c0_i32_0 : i32, i32
  }
  func.func @transform_3(%arg0: i32) -> (i32, i32) {
    %c0_i32 = arith.constant 0 : i32
    %c0_i32_0 = arith.constant 0 : i32
    %c0_i32_1 = arith.constant 0 : i32
    return %c0_i32, %c0_i32_0 : i32, i32
  }
  func.func @transform_4(%arg0: i32) -> (i32, i32) {
    %c0_i32 = arith.constant 0 : i32
    %c0_i32_0 = arith.constant 0 : i32
    %c0_i32_1 = arith.constant 0 : i32
    return %c0_i32, %c0_i32_0 : i32, i32
  }
  func.func @transform_5(%arg0: i32) -> (i32, i32) {
    %c0_i32 = arith.constant 0 : i32
    %c0_i32_0 = arith.constant 0 : i32
    %c0_i32_1 = arith.constant 0 : i32
    return %c0_i32, %c0_i32_0 : i32, i32
  }
  func.func @transform_6(%arg0: i32) -> (i32, i32) {
    %c0_i32 = arith.constant 0 : i32
    %c0_i32_0 = arith.constant 0 : i32
    %c0_i32_1 = arith.constant 0 : i32
    return %c0_i32, %c0_i32_0 : i32, i32
  }
  func.func @transform_7(%arg0: i32) -> (i32, i32) {
    %c0_i32 = arith.constant 0 : i32
    %c0_i32_0 = arith.constant 0 : i32
    return %arg0, %c0_i32 : i32, i32
  }
  func.func @transform_8(%arg0: i32) -> (i32, i32) {
    %c0_i32 = arith.constant 0 : i32
    %c0_i32_0 = arith.constant 0 : i32
    return %arg0, %c0_i32 : i32, i32
  }
}

</mosaic_0001>

<llo_original>
// kernel: tpu_custom_call.1
$region0: #{tpu_custom_call.1}
  #allocation0 [shape = 'u32[]', space=smem, size = 0x4, offset = 0x4, fixed_abs, tag = 'smem constant byte address 0x4 - core index']
  #allocation1 [shape = 'u32[72,128]{1,0:T(1,128)}', space=vmem, size = 0x9000, scoped, tag = 'internal scratch']
  #allocation2 [shape = 'f32[1,1]{1,0:T(1,128)S(1)}', space=vmem, size = 0x200, scoped, tag = 'scoped memory for tpu_custom_call.1']
  %s0 = inlined_call_operand.vmem [shape: f32[16,32], index: 0, kind: input, shape index: {}]
  %s1 = inlined_call_operand.vmem [shape: f32[32,128], index: 1, kind: input, shape index: {}]
  %s2 = inlined_call_operand.vmem [shape: f32[1,128], index: 2, kind: input, shape index: {}]
  %s3 = inlined_call_operand.vmem [shape: f32[128,8], index: 3, kind: input, shape index: {}]
  %s4 = inlined_call_operand.vmem [shape: f32[1,8], index: 4, kind: input, shape index: {}]
  %s5 = inlined_call_operand.vmem [shape: f32[128,1], index: 5, kind: input, shape index: {}]
  %s6 = inlined_call_operand.<no memory space> [shape: f32[1,1], index: 6, kind: input, shape index: {}]
  %s7 = inlined_call_operand.vmem [shape: f32[16,8], index: 7, kind: output, shape index: {0}]
  %s8 = inlined_call_operand.vmem [shape: f32[16,1], index: 8, kind: output, shape index: {1}]
  %9 = xla_tuple %s7, %s8
  %s10 = sld [smem:[#allocation0]]
  $region46: #{tpu_custom_call.1} parent=0
    _
  %s12 = ssub.s32 1, %s10
  %s13 = scalar_select 0, %s12, %s10
  %v14 = vstv %s6
  %15 = vst [vmem:[#allocation2] sm:$0x1] %v14
  // Predicated region
  $region2: #{tpu_custom_call.1} parent=0 // pred_check
    _
  $region3: #{tpu_custom_call.1} parent=0 // pred_check_branch
    %17 = sbr.rel (0) target = $region5
  $region4: #{tpu_custom_call.1} parent=0 // pred_region
    _
  $region5: #{tpu_custom_call.1} parent=0 // pred_fallthru
    _
  // Predicated region
  $region6: #{tpu_custom_call.1} parent=0 // pred_check
    _
  $region7: #{tpu_custom_call.1} parent=0 // pred_check_branch
    %19 = sbr.rel (0) target = $region9
  $region8: #{tpu_custom_call.1} parent=0 // pred_region
    _
  $region9: #{tpu_custom_call.1} parent=0 // pred_fallthru
    _
  // Predicated region
  $region10: #{tpu_custom_call.1} parent=0 // pred_check
    _
  $region11: #{tpu_custom_call.1} parent=0 // pred_check_branch
    %21 = sbr.rel (0) target = $region13
  $region12: #{tpu_custom_call.1} parent=0 // pred_region
    _
  $region13: #{tpu_custom_call.1} parent=0 // pred_fallthru
    _
  // Predicated region
  $region14: #{tpu_custom_call.1} parent=0 // pred_check
    _
  $region15: #{tpu_custom_call.1} parent=0 // pred_check_branch
    %23 = sbr.rel (0) target = $region17
  $region16: #{tpu_custom_call.1} parent=0 // pred_region
    _
  $region17: #{tpu_custom_call.1} parent=0 // pred_fallthru
    _
  // Predicated region
  $region18: #{tpu_custom_call.1} parent=0 // pred_check
    _
  $region19: #{tpu_custom_call.1} parent=0 // pred_check_branch
    %25 = sbr.rel (0) target = $region21
  $region20: #{tpu_custom_call.1} parent=0 // pred_region
    _
  $region21: #{tpu_custom_call.1} parent=0 // pred_fallthru
    _
  // Predicated region
  $region22: #{tpu_custom_call.1} parent=0 // pred_check
    _
  $region23: #{tpu_custom_call.1} parent=0 // pred_check_branch
    %27 = sbr.rel (0) target = $region25
  $region24: #{tpu_custom_call.1} parent=0 // pred_region
    _
  $region25: #{tpu_custom_call.1} parent=0 // pred_fallthru
    _
  // Predicated region
  $region26: #{tpu_custom_call.1} parent=0 // pred_check
    _
  $region27: #{tpu_custom_call.1} parent=0 // pred_check_branch
    %29 = sbr.rel (0) target = $region29
  $region28: #{tpu_custom_call.1} parent=0 // pred_region
    _
  $region29: #{tpu_custom_call.1} parent=0 // pred_fallthru
    _
  %v30 = vld [vmem:[%s0] sm:$0xff]
  %v31 = vld [vmem:[%s0 + $0x8] sm:$0xff]
  %v32 = vld [vmem:[%s1] sm:$0xff]
  %v33 = vld [vmem:[%s1 + $0x8] sm:$0xff]
  %v34 = vld [vmem:[%s1 + $0x10] sm:$0xff]
  %v35 = vld [vmem:[%s1 + $0x18] sm:$0xff]
  %v36 = vld [vmem:[%s2] sm:$0x1]
  %v38 = vperm.slane %v36, 0
  %vm40 = vcmask 261120
  %v42 = vsel %vm40, %v30, 0
  %v45 = vsel %vm40, %v31, 0
  %47 = vmatpush.msra.mxu0 0.0
  %48 = vmatpush.msra.mxu0 0.0
  %49 = vmatpush.msra.mxu0 0.0
  %50 = vmatpush.msra.mxu0 0.0
  %51 = vmatpush.msra.mxu0 0.0
  %52 = vmatpush.msra.mxu0 0.0
  %53 = vmatpush.msra.mxu0 0.0
  %54 = vmatpush.msra.mxu0 0.0
  %55 = vmatpush.msra.mxu0 0.0
  %56 = vmatpush.msra.mxu0 0.0
  %57 = vmatpush.msra.mxu0 0.0
  %58 = vmatpush.msra.mxu0 0.0
  %v59 = vand.u32 %v35, 4294901760
  %60 = vmatpush.msra.mxu0 %v59
  %v61 = vand.u32 %v34, 4294901760
  %62 = vmatpush.msra.mxu0 %v61
  %v63 = vand.u32 %v33, 4294901760
  %64 = vmatpush.msra.mxu0 %v63
  %v65 = vand.u32 %v32, 4294901760
  %66 = vmatpush.msra.mxu0 %v65
  %v67 = vand.u32 %v42, 4294901760
  %v68 = vsub.f32 %v42, %v67
  %v69 = vand.u32 %v68, 4294901760
  %v70 = vsub.f32 %v68, %v69
  %v71 = vand.u32 %v70, 4294901760
  %72 = vmatmul.f32.gmra.mxu0 %v71
  %v73 = vpop.f32.mrf.mxu0
  %v74 = vadd.f32 %v38, %v73
  %v75 = vand.u32 %v45, 4294901760
  %v76 = vsub.f32 %v45, %v75
  %v77 = vand.u32 %v76, 4294901760
  %v78 = vsub.f32 %v76, %v77
  %v79 = vand.u32 %v78, 4294901760
  %80 = vmatmul.f32.gmra.mxu0 %v79
  %v81 = vpop.f32.mrf.mxu0
  %v82 = vadd.f32 %v38, %v81
  %83 = vdwg.mxu0
  %84 = vmatpush.msra.mxu0 0.0
  %85 = vmatpush.msra.mxu0 0.0
  %86 = vmatpush.msra.mxu0 0.0
  %87 = vmatpush.msra.mxu0 0.0
  %88 = vmatpush.msra.mxu0 0.0
  %89 = vmatpush.msra.mxu0 0.0
  %90 = vmatpush.msra.mxu0 0.0
  %91 = vmatpush.msra.mxu0 0.0
  %92 = vmatpush.msra.mxu0 0.0
  %93 = vmatpush.msra.mxu0 0.0
  %94 = vmatpush.msra.mxu0 0.0
  %95 = vmatpush.msra.mxu0 0.0
  %v96 = vand.u32 %v35, 4294901760
  %v97 = vsub.f32 %v35, %v96
  %v98 = vand.u32 %v97, 4294901760
  %v99 = vsub.f32 %v97, %v98
  %v100 = vand.u32 %v99, 4294901760
  %101 = vmatpush.msra.mxu0 %v100
  %v102 = vand.u32 %v34, 4294901760
  %v103 = vsub.f32 %v34, %v102
  %v104 = vand.u32 %v103, 4294901760
  %v105 = vsub.f32 %v103, %v104
  %v106 = vand.u32 %v105, 4294901760
  %107 = vmatpush.msra.mxu0 %v106
  %v108 = vand.u32 %v33, 4294901760
  %v109 = vsub.f32 %v33, %v108
  %v110 = vand.u32 %v109, 4294901760
  %v111 = vsub.f32 %v109, %v110
  %v112 = vand.u32 %v111, 4294901760
  %113 = vmatpush.msra.mxu0 %v112
  %v114 = vand.u32 %v32, 4294901760
  %v115 = vsub.f32 %v32, %v114
  %v116 = vand.u32 %v115, 4294901760
  %v117 = vsub.f32 %v115, %v116
  %v118 = vand.u32 %v117, 4294901760
  %119 = vmatpush.msra.mxu0 %v118
  %v120 = vand.u32 %v42, 4294901760
  %121 = vmatmul.f32.gmra.mxu0 %v120
  %v122 = vpop.f32.mrf.mxu0
  %v123 = vadd.f32 %v74, %v122
  %v124 = vand.u32 %v45, 4294901760
  %125 = vmatmul.f32.gmra.mxu0 %v124
  %v126 = vpop.f32.mrf.mxu0
  %v127 = vadd.f32 %v82, %v126
  %128 = vdwg.mxu0
  %129 = vmatpush.msra.mxu0 0.0
  %130 = vmatpush.msra.mxu0 0.0
  %131 = vmatpush.msra.mxu0 0.0
  %132 = vmatpush.msra.mxu0 0.0
  %133 = vmatpush.msra.mxu0 0.0
  %134 = vmatpush.msra.mxu0 0.0
  %135 = vmatpush.msra.mxu0 0.0
  %136 = vmatpush.msra.mxu0 0.0
  %137 = vmatpush.msra.mxu0 0.0
  %138 = vmatpush.msra.mxu0 0.0
  %139 = vmatpush.msra.mxu0 0.0
  %140 = vmatpush.msra.mxu0 0.0
  %v141 = vand.u32 %v35, 4294901760
  %v142 = vsub.f32 %v35, %v141
  %143 = vmatpush.msra.mxu0 %v142
  %v144 = vand.u32 %v34, 4294901760
  %v145 = vsub.f32 %v34, %v144
  %146 = vmatpush.msra.mxu0 %v145
  %v147 = vand.u32 %v33, 4294901760
  %v148 = vsub.f32 %v33, %v147
  %149 = vmatpush.msra.mxu0 %v148
  %v150 = vand.u32 %v32, 4294901760
  %v151 = vsub.f32 %v32, %v150
  %152 = vmatpush.msra.mxu0 %v151
  %v153 = vand.u32 %v42, 4294901760
  %v154 = vsub.f32 %v42, %v153
  %155 = vmatmul.f32.gmra.mxu0 %v154
  %v156 = vpop.f32.mrf.mxu0
  %v157 = vadd.f32 %v123, %v156
  %v158 = vand.u32 %v45, 4294901760
  %v159 = vsub.f32 %v45, %v158
  %160 = vmatmul.f32.gmra.mxu0 %v159
  %v161 = vpop.f32.mrf.mxu0
  %v162 = vadd.f32 %v127, %v161
  %163 = vdwg.mxu0
  %164 = vmatpush.msra.mxu0 0.0
  %165 = vmatpush.msra.mxu0 0.0
  %166 = vmatpush.msra.mxu0 0.0
  %167 = vmatpush.msra.mxu0 0.0
  %168 = vmatpush.msra.mxu0 0.0
  %169 = vmatpush.msra.mxu0 0.0
  %170 = vmatpush.msra.mxu0 0.0
  %171 = vmatpush.msra.mxu0 0.0
  %172 = vmatpush.msra.mxu0 0.0
  %173 = vmatpush.msra.mxu0 0.0
  %174 = vmatpush.msra.mxu0 0.0
  %175 = vmatpush.msra.mxu0 0.0
  %v176 = vand.u32 %v35, 4294901760
  %177 = vmatpush.msra.mxu0 %v176
  %v178 = vand.u32 %v34, 4294901760
  %179 = vmatpush.msra.mxu0 %v178
  %v180 = vand.u32 %v33, 4294901760
  %181 = vmatpush.msra.mxu0 %v180
  %v182 = vand.u32 %v32, 4294901760
  %183 = vmatpush.msra.mxu0 %v182
  %v184 = vand.u32 %v42, 4294901760
  %v185 = vsub.f32 %v42, %v184
  %v186 = vand.u32 %v185, 4294901760
  %187 = vmatmul.f32.gmra.mxu0 %v186
  %v188 = vpop.f32.mrf.mxu0
  %v189 = vadd.f32 %v157, %v188
  %v190 = vand.u32 %v45, 4294901760
  %v191 = vsub.f32 %v45, %v190
  %v192 = vand.u32 %v191, 4294901760
  %193 = vmatmul.f32.gmra.mxu0 %v192
  %v194 = vpop.f32.mrf.mxu0
  %v195 = vadd.f32 %v162, %v194
  %196 = vdwg.mxu0
  %197 = vmatpush.msra.mxu0 0.0
  %198 = vmatpush.msra.mxu0 0.0
  %199 = vmatpush.msra.mxu0 0.0
  %200 = vmatpush.msra.mxu0 0.0
  %201 = vmatpush.msra.mxu0 0.0
  %202 = vmatpush.msra.mxu0 0.0
  %203 = vmatpush.msra.mxu0 0.0
  %204 = vmatpush.msra.mxu0 0.0
  %205 = vmatpush.msra.mxu0 0.0
  %206 = vmatpush.msra.mxu0 0.0
  %207 = vmatpush.msra.mxu0 0.0
  %208 = vmatpush.msra.mxu0 0.0
  %v209 = vand.u32 %v35, 4294901760
  %v210 = vsub.f32 %v35, %v209
  %v211 = vand.u32 %v210, 4294901760
  %212 = vmatpush.msra.mxu0 %v211
  %v213 = vand.u32 %v34, 4294901760
  %v214 = vsub.f32 %v34, %v213
  %v215 = vand.u32 %v214, 4294901760
  %216 = vmatpush.msra.mxu0 %v215
  %v217 = vand.u32 %v33, 4294901760
  %v218 = vsub.f32 %v33, %v217
  %v219 = vand.u32 %v218, 4294901760
  %220 = vmatpush.msra.mxu0 %v219
  %v221 = vand.u32 %v32, 4294901760
  %v222 = vsub.f32 %v32, %v221
  %v223 = vand.u32 %v222, 4294901760
  %224 = vmatpush.msra.mxu0 %v223
  %v225 = vand.u32 %v42, 4294901760
  %226 = vmatmul.f32.gmra.mxu0 %v225
  %v227 = vpop.f32.mrf.mxu0
  %v228 = vadd.f32 %v189, %v227
  %v229 = vand.u32 %v45, 4294901760
  %230 = vmatmul.f32.gmra.mxu0 %v229
  %v231 = vpop.f32.mrf.mxu0
  %v232 = vadd.f32 %v195, %v231
  %233 = vdwg.mxu0
  %234 = vmatpush.msra.mxu0 0.0
  %235 = vmatpush.msra.mxu0 0.0
  %236 = vmatpush.msra.mxu0 0.0
  %237 = vmatpush.msra.mxu0 0.0
  %238 = vmatpush.msra.mxu0 0.0
  %239 = vmatpush.msra.mxu0 0.0
  %240 = vmatpush.msra.mxu0 0.0
  %241 = vmatpush.msra.mxu0 0.0
  %242 = vmatpush.msra.mxu0 0.0
  %243 = vmatpush.msra.mxu0 0.0
  %244 = vmatpush.msra.mxu0 0.0
  %245 = vmatpush.msra.mxu0 0.0
  %v246 = vand.u32 %v35, 4294901760
  %247 = vmatpush.msra.mxu0 %v246
  %v248 = vand.u32 %v34, 4294901760
  %249 = vmatpush.msra.mxu0 %v248
  %v250 = vand.u32 %v33, 4294901760
  %251 = vmatpush.msra.mxu0 %v250
  %v252 = vand.u32 %v32, 4294901760
  %253 = vmatpush.msra.mxu0 %v252
  %v254 = vand.u32 %v42, 4294901760
  %255 = vmatmul.f32.gmra.mxu0 %v254
  %v256 = vpop.f32.mrf.mxu0
  %v257 = vadd.f32 %v228, %v256
  %v258 = vand.u32 %v45, 4294901760
  %259 = vmatmul.f32.gmra.mxu0 %v258
  %v260 = vpop.f32.mrf.mxu0
  %v261 = vadd.f32 %v232, %v260
  %262 = vdwg.mxu0
  %v263 = vmax.f32 %v257, 0.0
  %v264 = vmax.f32 %v261, 0.0
  %v265 = vld [vmem:[%s3] sm:$0xff]
  %v266 = vld [vmem:[%s3 + $0x8] sm:$0xff]
  %v267 = vld [vmem:[%s3 + $0x10] sm:$0xff]
  %v268 = vld [vmem:[%s3 + $0x18] sm:$0xff]
  %v269 = vld [vmem:[%s3 + $0x20] sm:$0xff]
  %v270 = vld [vmem:[%s3 + $0x28] sm:$0xff]
  %v271 = vld [vmem:[%s3 + $0x30] sm:$0xff]
  %v272 = vld [vmem:[%s3 + $0x38] sm:$0xff]
  %v273 = vld [vmem:[%s3 + $0x40] sm:$0xff]
  %v274 = vld [vmem:[%s3 + $0x48] sm:$0xff]
  %v275 = vld [vmem:[%s3 + $0x50] sm:$0xff]
  %v276 = vld [vmem:[%s3 + $0x58] sm:$0xff]
  %v277 = vld [vmem:[%s3 + $0x60] sm:$0xff]
  %v278 = vld [vmem:[%s3 + $0x68] sm:$0xff]
  %v279 = vld [vmem:[%s3 + $0x70] sm:$0xff]
  %v280 = vld [vmem:[%s3 + $0x78] sm:$0xff]
  %v281 = vld [vmem:[%s4] sm:$0x1]
  %v283 = vperm.slane %v281, 0
  %v285 = vand.u32 %v280, 4294901760
  %286 = vmatpush.msra.mxu0 %v285
  %v287 = vand.u32 %v279, 4294901760
  %288 = vmatpush.msra.mxu0 %v287
  %v289 = vand.u32 %v278, 4294901760
  %290 = vmatpush.msra.mxu0 %v289
  %v291 = vand.u32 %v277, 4294901760
  %292 = vmatpush.msra.mxu0 %v291
  %v293 = vand.u32 %v276, 4294901760
  %294 = vmatpush.msra.mxu0 %v293
  %v295 = vand.u32 %v275, 4294901760
  %296 = vmatpush.msra.mxu0 %v295
  %v297 = vand.u32 %v274, 4294901760
  %298 = vmatpush.msra.mxu0 %v297
  %v299 = vand.u32 %v273, 4294901760
  %300 = vmatpush.msra.mxu0 %v299
  %v301 = vand.u32 %v272, 4294901760
  %302 = vmatpush.msra.mxu0 %v301
  %v303 = vand.u32 %v271, 4294901760
  %304 = vmatpush.msra.mxu0 %v303
  %v305 = vand.u32 %v270, 4294901760
  %306 = vmatpush.msra.mxu0 %v305
  %v307 = vand.u32 %v269, 4294901760
  %308 = vmatpush.msra.mxu0 %v307
  %v309 = vand.u32 %v268, 4294901760
  %310 = vmatpush.msra.mxu0 %v309
  %v311 = vand.u32 %v267, 4294901760
  %312 = vmatpush.msra.mxu0 %v311
  %v313 = vand.u32 %v266, 4294901760
  %314 = vmatpush.msra.mxu0 %v313
  %v315 = vand.u32 %v265, 4294901760
  %316 = vmatpush.msra.mxu0 %v315
  %v317 = vand.u32 %v263, 4294901760
  %v318 = vsub.f32 %v263, %v317
  %v319 = vand.u32 %v318, 4294901760
  %v320 = vsub.f32 %v318, %v319
  %v321 = vand.u32 %v320, 4294901760
  %322 = vmatmul.f32.gmra.mxu0 %v321
  %v323 = vpop.f32.mrf.mxu0
  %v324 = vadd.f32 %v283, %v323
  %v325 = vand.u32 %v264, 4294901760
  %v326 = vsub.f32 %v264, %v325
  %v327 = vand.u32 %v326, 4294901760
  %v328 = vsub.f32 %v326, %v327
  %v329 = vand.u32 %v328, 4294901760
  %330 = vmatmul.f32.gmra.mxu0 %v329
  %v331 = vpop.f32.mrf.mxu0
  %v332 = vadd.f32 %v283, %v331
  %333 = vdwg.mxu0
  %v334 = vand.u32 %v280, 4294901760
  %v335 = vsub.f32 %v280, %v334
  %v336 = vand.u32 %v335, 4294901760
  %v337 = vsub.f32 %v335, %v336
  %v338 = vand.u32 %v337, 4294901760
  %339 = vmatpush.msra.mxu0 %v338
  %v340 = vand.u32 %v279, 4294901760
  %v341 = vsub.f32 %v279, %v340
  %v342 = vand.u32 %v341, 4294901760
  %v343 = vsub.f32 %v341, %v342
  %v344 = vand.u32 %v343, 4294901760
  %345 = vmatpush.msra.mxu0 %v344
  %v346 = vand.u32 %v278, 4294901760
  %v347 = vsub.f32 %v278, %v346
  %v348 = vand.u32 %v347, 4294901760
  %v349 = vsub.f32 %v347, %v348
  %v350 = vand.u32 %v349, 4294901760
  %351 = vmatpush.msra.mxu0 %v350
  %v352 = vand.u32 %v277, 4294901760
  %v353 = vsub.f32 %v277, %v352
  %v354 = vand.u32 %v353, 4294901760
  %v355 = vsub.f32 %v353, %v354
  %v356 = vand.u32 %v355, 4294901760
  %357 = vmatpush.msra.mxu0 %v356
  %v358 = vand.u32 %v276, 4294901760
  %v359 = vsub.f32 %v276, %v358
  %v360 = vand.u32 %v359, 4294901760
  %v361 = vsub.f32 %v359, %v360
  %v362 = vand.u32 %v361, 4294901760
  %363 = vmatpush.msra.mxu0 %v362
  %v364 = vand.u32 %v275, 4294901760
  %v365 = vsub.f32 %v275, %v364
  %v366 = vand.u32 %v365, 4294901760
  %v367 = vsub.f32 %v365, %v366
  %v368 = vand.u32 %v367, 4294901760
  %369 = vmatpush.msra.mxu0 %v368
  %v370 = vand.u32 %v274, 4294901760
  %v371 = vsub.f32 %v274, %v370
  %v372 = vand.u32 %v371, 4294901760
  %v373 = vsub.f32 %v371, %v372
  %v374 = vand.u32 %v373, 4294901760
  %375 = vmatpush.msra.mxu0 %v374
  %v376 = vand.u32 %v273, 4294901760
  %v377 = vsub.f32 %v273, %v376
  %v378 = vand.u32 %v377, 4294901760
  %v379 = vsub.f32 %v377, %v378
  %v380 = vand.u32 %v379, 4294901760
  %381 = vmatpush.msra.mxu0 %v380
  %v382 = vand.u32 %v272, 4294901760
  %v383 = vsub.f32 %v272, %v382
  %v384 = vand.u32 %v383, 4294901760
  %v385 = vsub.f32 %v383, %v384
  %v386 = vand.u32 %v385, 4294901760
  %387 = vmatpush.msra.mxu0 %v386
  %v388 = vand.u32 %v271, 4294901760
  %v389 = vsub.f32 %v271, %v388
  %v390 = vand.u32 %v389, 4294901760
  %v391 = vsub.f32 %v389, %v390
  %v392 = vand.u32 %v391, 4294901760
  %393 = vmatpush.msra.mxu0 %v392
  %v394 = vand.u32 %v270, 4294901760
  %v395 = vsub.f32 %v270, %v394
  %v396 = vand.u32 %v395, 4294901760
  %v397 = vsub.f32 %v395, %v396
  %v398 = vand.u32 %v397, 4294901760
  %399 = vmatpush.msra.mxu0 %v398
  %v400 = vand.u32 %v269, 4294901760
  %v401 = vsub.f32 %v269, %v400
  %v402 = vand.u32 %v401, 4294901760
  %v403 = vsub.f32 %v401, %v402
  %v404 = vand.u32 %v403, 4294901760
  %405 = vmatpush.msra.mxu0 %v404
  %v406 = vand.u32 %v268, 4294901760
  %v407 = vsub.f32 %v268, %v406
  %v408 = vand.u32 %v407, 4294901760
  %v409 = vsub.f32 %v407, %v408
  %v410 = vand.u32 %v409, 4294901760
  %411 = vmatpush.msra.mxu0 %v410
  %v412 = vand.u32 %v267, 4294901760
  %v413 = vsub.f32 %v267, %v412
  %v414 = vand.u32 %v413, 4294901760
  %v415 = vsub.f32 %v413, %v414
  %v416 = vand.u32 %v415, 4294901760
  %417 = vmatpush.msra.mxu0 %v416
  %v418 = vand.u32 %v266, 4294901760
  %v419 = vsub.f32 %v266, %v418
  %v420 = vand.u32 %v419, 4294901760
  %v421 = vsub.f32 %v419, %v420
  %v422 = vand.u32 %v421, 4294901760
  %423 = vmatpush.msra.mxu0 %v422
  %v424 = vand.u32 %v265, 4294901760
  %v425 = vsub.f32 %v265, %v424
  %v426 = vand.u32 %v425, 4294901760
  %v427 = vsub.f32 %v425, %v426
  %v428 = vand.u32 %v427, 4294901760
  %429 = vmatpush.msra.mxu0 %v428
  %v430 = vand.u32 %v263, 4294901760
  %431 = vmatmul.f32.gmra.mxu0 %v430
  %v432 = vpop.f32.mrf.mxu0
  %v433 = vadd.f32 %v324, %v432
  %v434 = vand.u32 %v264, 4294901760
  %435 = vmatmul.f32.gmra.mxu0 %v434
  %v436 = vpop.f32.mrf.mxu0
  %v437 = vadd.f32 %v332, %v436
  %438 = vdwg.mxu0
  %v439 = vand.u32 %v280, 4294901760
  %v440 = vsub.f32 %v280, %v439
  %441 = vmatpush.msra.mxu0 %v440
  %v442 = vand.u32 %v279, 4294901760
  %v443 = vsub.f32 %v279, %v442
  %444 = vmatpush.msra.mxu0 %v443
  %v445 = vand.u32 %v278, 4294901760
  %v446 = vsub.f32 %v278, %v445
  %447 = vmatpush.msra.mxu0 %v446
  %v448 = vand.u32 %v277, 4294901760
  %v449 = vsub.f32 %v277, %v448
  %450 = vmatpush.msra.mxu0 %v449
  %v451 = vand.u32 %v276, 4294901760
  %v452 = vsub.f32 %v276, %v451
  %453 = vmatpush.msra.mxu0 %v452
  %v454 = vand.u32 %v275, 4294901760
  %v455 = vsub.f32 %v275, %v454
  %456 = vmatpush.msra.mxu0 %v455
  %v457 = vand.u32 %v274, 4294901760
  %v458 = vsub.f32 %v274, %v457
  %459 = vmatpush.msra.mxu0 %v458
  %v460 = vand.u32 %v273, 4294901760
  %v461 = vsub.f32 %v273, %v460
  %462 = vmatpush.msra.mxu0 %v461
  %v463 = vand.u32 %v272, 4294901760
  %v464 = vsub.f32 %v272, %v463
  %465 = vmatpush.msra.mxu0 %v464
  %v466 = vand.u32 %v271, 4294901760
  %v467 = vsub.f32 %v271, %v466
  %468 = vmatpush.msra.mxu0 %v467
  %v469 = vand.u32 %v270, 4294901760
  %v470 = vsub.f32 %v270, %v469
  %471 = vmatpush.msra.mxu0 %v470
  %v472 = vand.u32 %v269, 4294901760
  %v473 = vsub.f32 %v269, %v472
  %474 = vmatpush.msra.mxu0 %v473
  %v475 = vand.u32 %v268, 4294901760
  %v476 = vsub.f32 %v268, %v475
  %477 = vmatpush.msra.mxu0 %v476
  %v478 = vand.u32 %v267, 4294901760
  %v479 = vsub.f32 %v267, %v478
  %480 = vmatpush.msra.mxu0 %v479
  %v481 = vand.u32 %v266, 4294901760
  %v482 = vsub.f32 %v266, %v481
  %483 = vmatpush.msra.mxu0 %v482
  %v484 = vand.u32 %v265, 4294901760
  %v485 = vsub.f32 %v265, %v484
  %486 = vmatpush.msra.mxu0 %v485
  %v487 = vand.u32 %v263, 4294901760
  %v488 = vsub.f32 %v263, %v487
  %489 = vmatmul.f32.gmra.mxu0 %v488
  %v490 = vpop.f32.mrf.mxu0
  %v491 = vadd.f32 %v433, %v490
  %v492 = vand.u32 %v264, 4294901760
  %v493 = vsub.f32 %v264, %v492
  %494 = vmatmul.f32.gmra.mxu0 %v493
  %v495 = vpop.f32.mrf.mxu0
  %v496 = vadd.f32 %v437, %v495
  %497 = vdwg.mxu0
  %v498 = vand.u32 %v280, 4294901760
  %499 = vmatpush.msra.mxu0 %v498
  %v500 = vand.u32 %v279, 4294901760
  %501 = vmatpush.msra.mxu0 %v500
  %v502 = vand.u32 %v278, 4294901760
  %503 = vmatpush.msra.mxu0 %v502
  %v504 = vand.u32 %v277, 4294901760
  %505 = vmatpush.msra.mxu0 %v504
  %v506 = vand.u32 %v276, 4294901760
  %507 = vmatpush.msra.mxu0 %v506
  %v508 = vand.u32 %v275, 4294901760
  %509 = vmatpush.msra.mxu0 %v508
  %v510 = vand.u32 %v274, 4294901760
  %511 = vmatpush.msra.mxu0 %v510
  %v512 = vand.u32 %v273, 4294901760
  %513 = vmatpush.msra.mxu0 %v512
  %v514 = vand.u32 %v272, 4294901760
  %515 = vmatpush.msra.mxu0 %v514
  %v516 = vand.u32 %v271, 4294901760
  %517 = vmatpush.msra.mxu0 %v516
  %v518 = vand.u32 %v270, 4294901760
  %519 = vmatpush.msra.mxu0 %v518
  %v520 = vand.u32 %v269, 4294901760
  %521 = vmatpush.msra.mxu0 %v520
  %v522 = vand.u32 %v268, 4294901760
  %523 = vmatpush.msra.mxu0 %v522
  %v524 = vand.u32 %v267, 4294901760
  %525 = vmatpush.msra.mxu0 %v524
  %v526 = vand.u32 %v266, 4294901760
  %527 = vmatpush.msra.mxu0 %v526
  %v528 = vand.u32 %v265, 4294901760
  %529 = vmatpush.msra.mxu0 %v528
  %v530 = vand.u32 %v263, 4294901760
  %v531 = vsub.f32 %v263, %v530
  %v532 = vand.u32 %v531, 4294901760
  %533 = vmatmul.f32.gmra.mxu0 %v532
  %v534 = vpop.f32.mrf.mxu0
  %v535 = vadd.f32 %v491, %v534
  %v536 = vand.u32 %v264, 4294901760
  %v537 = vsub.f32 %v264, %v536
  %v538 = vand.u32 %v537, 4294901760
  %539 = vmatmul.f32.gmra.mxu0 %v538
  %v540 = vpop.f32.mrf.mxu0
  %v541 = vadd.f32 %v496, %v540
  %542 = vdwg.mxu0
  %v543 = vand.u32 %v280, 4294901760
  %v544 = vsub.f32 %v280, %v543
  %v545 = vand.u32 %v544, 4294901760
  %546 = vmatpush.msra.mxu0 %v545
  %v547 = vand.u32 %v279, 4294901760
  %v548 = vsub.f32 %v279, %v547
  %v549 = vand.u32 %v548, 4294901760
  %550 = vmatpush.msra.mxu0 %v549
  %v551 = vand.u32 %v278, 4294901760
  %v552 = vsub.f32 %v278, %v551
  %v553 = vand.u32 %v552, 4294901760
  %554 = vmatpush.msra.mxu0 %v553
  %v555 = vand.u32 %v277, 4294901760
  %v556 = vsub.f32 %v277, %v555
  %v557 = vand.u32 %v556, 4294901760
  %558 = vmatpush.msra.mxu0 %v557
  %v559 = vand.u32 %v276, 4294901760
  %v560 = vsub.f32 %v276, %v559
  %v561 = vand.u32 %v560, 4294901760
  %562 = vmatpush.msra.mxu0 %v561
  %v563 = vand.u32 %v275, 4294901760
  %v564 = vsub.f32 %v275, %v563
  %v565 = vand.u32 %v564, 4294901760
  %566 = vmatpush.msra.mxu0 %v565
  %v567 = vand.u32 %v274, 4294901760
  %v568 = vsub.f32 %v274, %v567
  %v569 = vand.u32 %v568, 4294901760
  %570 = vmatpush.msra.mxu0 %v569
  %v571 = vand.u32 %v273, 4294901760
  %v572 = vsub.f32 %v273, %v571
  %v573 = vand.u32 %v572, 4294901760
  %574 = vmatpush.msra.mxu0 %v573
  %v575 = vand.u32 %v272, 4294901760
  %v576 = vsub.f32 %v272, %v575
  %v577 = vand.u32 %v576, 4294901760
  %578 = vmatpush.msra.mxu0 %v577
  %v579 = vand.u32 %v271, 4294901760
  %v580 = vsub.f32 %v271, %v579
  %v581 = vand.u32 %v580, 4294901760
  %582 = vmatpush.msra.mxu0 %v581
  %v583 = vand.u32 %v270, 4294901760
  %v584 = vsub.f32 %v270, %v583
  %v585 = vand.u32 %v584, 4294901760
  %586 = vmatpush.msra.mxu0 %v585
  %v587 = vand.u32 %v269, 4294901760
  %v588 = vsub.f32 %v269, %v587
  %v589 = vand.u32 %v588, 4294901760
  %590 = vmatpush.msra.mxu0 %v589
  %v591 = vand.u32 %v268, 4294901760
  %v592 = vsub.f32 %v268, %v591
  %v593 = vand.u32 %v592, 4294901760
  %594 = vmatpush.msra.mxu0 %v593
  %v595 = vand.u32 %v267, 4294901760
  %v596 = vsub.f32 %v267, %v595
  %v597 = vand.u32 %v596, 4294901760
  %598 = vmatpush.msra.mxu0 %v597
  %v599 = vand.u32 %v266, 4294901760
  %v600 = vsub.f32 %v266, %v599
  %v601 = vand.u32 %v600, 4294901760
  %602 = vmatpush.msra.mxu0 %v601
  %v603 = vand.u32 %v265, 4294901760
  %v604 = vsub.f32 %v265, %v603
  %v605 = vand.u32 %v604, 4294901760
  %606 = vmatpush.msra.mxu0 %v605
  %v607 = vand.u32 %v263, 4294901760
  %608 = vmatmul.f32.gmra.mxu0 %v607
  %v609 = vpop.f32.mrf.mxu0
  %v610 = vadd.f32 %v535, %v609
  %v611 = vand.u32 %v264, 4294901760
  %612 = vmatmul.f32.gmra.mxu0 %v611
  %v613 = vpop.f32.mrf.mxu0
  %v614 = vadd.f32 %v541, %v613
  %615 = vdwg.mxu0
  %v616 = vand.u32 %v280, 4294901760
  %617 = vmatpush.msra.mxu0 %v616
  %v618 = vand.u32 %v279, 4294901760
  %619 = vmatpush.msra.mxu0 %v618
  %v620 = vand.u32 %v278, 4294901760
  %621 = vmatpush.msra.mxu0 %v620
  %v622 = vand.u32 %v277, 4294901760
  %623 = vmatpush.msra.mxu0 %v622
  %v624 = vand.u32 %v276, 4294901760
  %625 = vmatpush.msra.mxu0 %v624
  %v626 = vand.u32 %v275, 4294901760
  %627 = vmatpush.msra.mxu0 %v626
  %v628 = vand.u32 %v274, 4294901760
  %629 = vmatpush.msra.mxu0 %v628
  %v630 = vand.u32 %v273, 4294901760
  %631 = vmatpush.msra.mxu0 %v630
  %v632 = vand.u32 %v272, 4294901760
  %633 = vmatpush.msra.mxu0 %v632
  %v634 = vand.u32 %v271, 4294901760
  %635 = vmatpush.msra.mxu0 %v634
  %v636 = vand.u32 %v270, 4294901760
  %637 = vmatpush.msra.mxu0 %v636
  %v638 = vand.u32 %v269, 4294901760
  %639 = vmatpush.msra.mxu0 %v638
  %v640 = vand.u32 %v268, 4294901760
  %641 = vmatpush.msra.mxu0 %v640
  %v642 = vand.u32 %v267, 4294901760
  %643 = vmatpush.msra.mxu0 %v642
  %v644 = vand.u32 %v266, 4294901760
  %645 = vmatpush.msra.mxu0 %v644
  %v646 = vand.u32 %v265, 4294901760
  %647 = vmatpush.msra.mxu0 %v646
  %v648 = vand.u32 %v263, 4294901760
  %649 = vmatmul.f32.gmra.mxu0 %v648
  %v650 = vpop.f32.mrf.mxu0
  %v651 = vadd.f32 %v610, %v650
  %v652 = vand.u32 %v264, 4294901760
  %653 = vmatmul.f32.gmra.mxu0 %v652
  %v654 = vpop.f32.mrf.mxu0
  %v655 = vadd.f32 %v614, %v654
  %656 = vdwg.mxu0
  %vm657 = vcmask 64512
  %658 = vst.msk [vmem:[%s7] sm:$0xff] %vm657, %v651
  %659 = vst.msk [vmem:[%s7 + $0x8] sm:$0xff] %vm657, %v655
  %v660 = vld [vmem:[%s5] sm:$0xff]
  %v661 = vld [vmem:[%s5 + $0x8] sm:$0xff]
  %v662 = vld [vmem:[%s5 + $0x10] sm:$0xff]
  %v663 = vld [vmem:[%s5 + $0x18] sm:$0xff]
  %v664 = vld [vmem:[%s5 + $0x20] sm:$0xff]
  %v665 = vld [vmem:[%s5 + $0x28] sm:$0xff]
  %v666 = vld [vmem:[%s5 + $0x30] sm:$0xff]
  %v667 = vld [vmem:[%s5 + $0x38] sm:$0xff]
  %v668 = vld [vmem:[%s5 + $0x40] sm:$0xff]
  %v669 = vld [vmem:[%s5 + $0x48] sm:$0xff]
  %v670 = vld [vmem:[%s5 + $0x50] sm:$0xff]
  %v671 = vld [vmem:[%s5 + $0x58] sm:$0xff]
  %v672 = vld [vmem:[%s5 + $0x60] sm:$0xff]
  %v673 = vld [vmem:[%s5 + $0x68] sm:$0xff]
  %v674 = vld [vmem:[%s5 + $0x70] sm:$0xff]
  %v675 = vld [vmem:[%s5 + $0x78] sm:$0xff]
  %v676 = vld [vmem:[#allocation2] sm:$0x1]
  %v678 = vperm.slane %v676, 0
  %v680 = vand.u32 %v675, 4294901760
  %681 = vmatpush.msra.mxu0 %v680
  %v682 = vand.u32 %v674, 4294901760
  %683 = vmatpush.msra.mxu0 %v682
  %v684 = vand.u32 %v673, 4294901760
  %685 = vmatpush.msra.mxu0 %v684
  %v686 = vand.u32 %v672, 4294901760
  %687 = vmatpush.msra.mxu0 %v686
  %v688 = vand.u32 %v671, 4294901760
  %689 = vmatpush.msra.mxu0 %v688
  %v690 = vand.u32 %v670, 4294901760
  %691 = vmatpush.msra.mxu0 %v690
  %v692 = vand.u32 %v669, 4294901760
  %693 = vmatpush.msra.mxu0 %v692
  %v694 = vand.u32 %v668, 4294901760
  %695 = vmatpush.msra.mxu0 %v694
  %v696 = vand.u32 %v667, 4294901760
  %697 = vmatpush.msra.mxu0 %v696
  %v698 = vand.u32 %v666, 4294901760
  %699 = vmatpush.msra.mxu0 %v698
  %v700 = vand.u32 %v665, 4294901760
  %701 = vmatpush.msra.mxu0 %v700
  %v702 = vand.u32 %v664, 4294901760
  %703 = vmatpush.msra.mxu0 %v702
  %v704 = vand.u32 %v663, 4294901760
  %705 = vmatpush.msra.mxu0 %v704
  %v706 = vand.u32 %v662, 4294901760
  %707 = vmatpush.msra.mxu0 %v706
  %v708 = vand.u32 %v661, 4294901760
  %709 = vmatpush.msra.mxu0 %v708
  %v710 = vand.u32 %v660, 4294901760
  %711 = vmatpush.msra.mxu0 %v710
  %v712 = vand.u32 %v263, 4294901760
  %v713 = vsub.f32 %v263, %v712
  %v714 = vand.u32 %v713, 4294901760
  %v715 = vsub.f32 %v713, %v714
  %v716 = vand.u32 %v715, 4294901760
  %717 = vmatmul.f32.gmra.mxu0 %v716
  %v718 = vpop.f32.mrf.mxu0
  %v719 = vadd.f32 %v678, %v718
  %v720 = vand.u32 %v264, 4294901760
  %v721 = vsub.f32 %v264, %v720
  %v722 = vand.u32 %v721, 4294901760
  %v723 = vsub.f32 %v721, %v722
  %v724 = vand.u32 %v723, 4294901760
  %725 = vmatmul.f32.gmra.mxu0 %v724
  %v726 = vpop.f32.mrf.mxu0
  %v727 = vadd.f32 %v678, %v726
  %728 = vdwg.mxu0
  %v729 = vand.u32 %v675, 4294901760
  %v730 = vsub.f32 %v675, %v729
  %v731 = vand.u32 %v730, 4294901760
  %v732 = vsub.f32 %v730, %v731
  %v733 = vand.u32 %v732, 4294901760
  %734 = vmatpush.msra.mxu0 %v733
  %v735 = vand.u32 %v674, 4294901760
  %v736 = vsub.f32 %v674, %v735
  %v737 = vand.u32 %v736, 4294901760
  %v738 = vsub.f32 %v736, %v737
  %v739 = vand.u32 %v738, 4294901760
  %740 = vmatpush.msra.mxu0 %v739
  %v741 = vand.u32 %v673, 4294901760
  %v742 = vsub.f32 %v673, %v741
  %v743 = vand.u32 %v742, 4294901760
  %v744 = vsub.f32 %v742, %v743
  %v745 = vand.u32 %v744, 4294901760
  %746 = vmatpush.msra.mxu0 %v745
  %v747 = vand.u32 %v672, 4294901760
  %v748 = vsub.f32 %v672, %v747
  %v749 = vand.u32 %v748, 4294901760
  %v750 = vsub.f32 %v748, %v749
  %v751 = vand.u32 %v750, 4294901760
  %752 = vmatpush.msra.mxu0 %v751
  %v753 = vand.u32 %v671, 4294901760
  %v754 = vsub.f32 %v671, %v753
  %v755 = vand.u32 %v754, 4294901760
  %v756 = vsub.f32 %v754, %v755
  %v757 = vand.u32 %v756, 4294901760
  %758 = vmatpush.msra.mxu0 %v757
  %v759 = vand.u32 %v670, 4294901760
  %v760 = vsub.f32 %v670, %v759
  %v761 = vand.u32 %v760, 4294901760
  %v762 = vsub.f32 %v760, %v761
  %v763 = vand.u32 %v762, 4294901760
  %764 = vmatpush.msra.mxu0 %v763
  %v765 = vand.u32 %v669, 4294901760
  %v766 = vsub.f32 %v669, %v765
  %v767 = vand.u32 %v766, 4294901760
  %v768 = vsub.f32 %v766, %v767
  %v769 = vand.u32 %v768, 4294901760
  %770 = vmatpush.msra.mxu0 %v769
  %v771 = vand.u32 %v668, 4294901760
  %v772 = vsub.f32 %v668, %v771
  %v773 = vand.u32 %v772, 4294901760
  %v774 = vsub.f32 %v772, %v773
  %v775 = vand.u32 %v774, 4294901760
  %776 = vmatpush.msra.mxu0 %v775
  %v777 = vand.u32 %v667, 4294901760
  %v778 = vsub.f32 %v667, %v777
  %v779 = vand.u32 %v778, 4294901760
  %v780 = vsub.f32 %v778, %v779
  %v781 = vand.u32 %v780, 4294901760
  %782 = vmatpush.msra.mxu0 %v781
  %v783 = vand.u32 %v666, 4294901760
  %v784 = vsub.f32 %v666, %v783
  %v785 = vand.u32 %v784, 4294901760
  %v786 = vsub.f32 %v784, %v785
  %v787 = vand.u32 %v786, 4294901760
  %788 = vmatpush.msra.mxu0 %v787
  %v789 = vand.u32 %v665, 4294901760
  %v790 = vsub.f32 %v665, %v789
  %v791 = vand.u32 %v790, 4294901760
  %v792 = vsub.f32 %v790, %v791
  %v793 = vand.u32 %v792, 4294901760
  %794 = vmatpush.msra.mxu0 %v793
  %v795 = vand.u32 %v664, 4294901760
  %v796 = vsub.f32 %v664, %v795
  %v797 = vand.u32 %v796, 4294901760
  %v798 = vsub.f32 %v796, %v797
  %v799 = vand.u32 %v798, 4294901760
  %800 = vmatpush.msra.mxu0 %v799
  %v801 = vand.u32 %v663, 4294901760
  %v802 = vsub.f32 %v663, %v801
  %v803 = vand.u32 %v802, 4294901760
  %v804 = vsub.f32 %v802, %v803
  %v805 = vand.u32 %v804, 4294901760
  %806 = vmatpush.msra.mxu0 %v805
  %v807 = vand.u32 %v662, 4294901760
  %v808 = vsub.f32 %v662, %v807
  %v809 = vand.u32 %v808, 4294901760
  %v810 = vsub.f32 %v808, %v809
  %v811 = vand.u32 %v810, 4294901760
  %812 = vmatpush.msra.mxu0 %v811
  %v813 = vand.u32 %v661, 4294901760
  %v814 = vsub.f32 %v661, %v813
  %v815 = vand.u32 %v814, 4294901760
  %v816 = vsub.f32 %v814, %v815
  %v817 = vand.u32 %v816, 4294901760
  %818 = vmatpush.msra.mxu0 %v817
  %v819 = vand.u32 %v660, 4294901760
  %v820 = vsub.f32 %v660, %v819
  %v821 = vand.u32 %v820, 4294901760
  %v822 = vsub.f32 %v820, %v821
  %v823 = vand.u32 %v822, 4294901760
  %824 = vmatpush.msra.mxu0 %v823
  %v825 = vand.u32 %v263, 4294901760
  %826 = vmatmul.f32.gmra.mxu0 %v825
  %v827 = vpop.f32.mrf.mxu0
  %v828 = vadd.f32 %v719, %v827
  %v829 = vand.u32 %v264, 4294901760
  %830 = vmatmul.f32.gmra.mxu0 %v829
  %v831 = vpop.f32.mrf.mxu0
  %v832 = vadd.f32 %v727, %v831
  %833 = vdwg.mxu0
  %v834 = vand.u32 %v675, 4294901760
  %v835 = vsub.f32 %v675, %v834
  %836 = vmatpush.msra.mxu0 %v835
  %v837 = vand.u32 %v674, 4294901760
  %v838 = vsub.f32 %v674, %v837
  %839 = vmatpush.msra.mxu0 %v838
  %v840 = vand.u32 %v673, 4294901760
  %v841 = vsub.f32 %v673, %v840
  %842 = vmatpush.msra.mxu0 %v841
  %v843 = vand.u32 %v672, 4294901760
  %v844 = vsub.f32 %v672, %v843
  %845 = vmatpush.msra.mxu0 %v844
  %v846 = vand.u32 %v671, 4294901760
  %v847 = vsub.f32 %v671, %v846
  %848 = vmatpush.msra.mxu0 %v847
  %v849 = vand.u32 %v670, 4294901760
  %v850 = vsub.f32 %v670, %v849
  %851 = vmatpush.msra.mxu0 %v850
  %v852 = vand.u32 %v669, 4294901760
  %v853 = vsub.f32 %v669, %v852
  %854 = vmatpush.msra.mxu0 %v853
  %v855 = vand.u32 %v668, 4294901760
  %v856 = vsub.f32 %v668, %v855
  %857 = vmatpush.msra.mxu0 %v856
  %v858 = vand.u32 %v667, 4294901760
  %v859 = vsub.f32 %v667, %v858
  %860 = vmatpush.msra.mxu0 %v859
  %v861 = vand.u32 %v666, 4294901760
  %v862 = vsub.f32 %v666, %v861
  %863 = vmatpush.msra.mxu0 %v862
  %v864 = vand.u32 %v665, 4294901760
  %v865 = vsub.f32 %v665, %v864
  %866 = vmatpush.msra.mxu0 %v865
  %v867 = vand.u32 %v664, 4294901760
  %v868 = vsub.f32 %v664, %v867
  %869 = vmatpush.msra.mxu0 %v868
  %v870 = vand.u32 %v663, 4294901760
  %v871 = vsub.f32 %v663, %v870
  %872 = vmatpush.msra.mxu0 %v871
  %v873 = vand.u32 %v662, 4294901760
  %v874 = vsub.f32 %v662, %v873
  %875 = vmatpush.msra.mxu0 %v874
  %v876 = vand.u32 %v661, 4294901760
  %v877 = vsub.f32 %v661, %v876
  %878 = vmatpush.msra.mxu0 %v877
  %v879 = vand.u32 %v660, 4294901760
  %v880 = vsub.f32 %v660, %v879
  %881 = vmatpush.msra.mxu0 %v880
  %v882 = vand.u32 %v263, 4294901760
  %v883 = vsub.f32 %v263, %v882
  %884 = vmatmul.f32.gmra.mxu0 %v883
  %v885 = vpop.f32.mrf.mxu0
  %v886 = vadd.f32 %v828, %v885
  %v887 = vand.u32 %v264, 4294901760
  %v888 = vsub.f32 %v264, %v887
  %889 = vmatmul.f32.gmra.mxu0 %v888
  %v890 = vpop.f32.mrf.mxu0
  %v891 = vadd.f32 %v832, %v890
  %892 = vdwg.mxu0
  %v893 = vand.u32 %v675, 4294901760
  %894 = vmatpush.msra.mxu0 %v893
  %v895 = vand.u32 %v674, 4294901760
  %896 = vmatpush.msra.mxu0 %v895
  %v897 = vand.u32 %v673, 4294901760
  %898 = vmatpush.msra.mxu0 %v897
  %v899 = vand.u32 %v672, 4294901760
  %900 = vmatpush.msra.mxu0 %v899
  %v901 = vand.u32 %v671, 4294901760
  %902 = vmatpush.msra.mxu0 %v901
  %v903 = vand.u32 %v670, 4294901760
  %904 = vmatpush.msra.mxu0 %v903
  %v905 = vand.u32 %v669, 4294901760
  %906 = vmatpush.msra.mxu0 %v905
  %v907 = vand.u32 %v668, 4294901760
  %908 = vmatpush.msra.mxu0 %v907
  %v909 = vand.u32 %v667, 4294901760
  %910 = vmatpush.msra.mxu0 %v909
  %v911 = vand.u32 %v666, 4294901760
  %912 = vmatpush.msra.mxu0 %v911
  %v913 = vand.u32 %v665, 4294901760
  %914 = vmatpush.msra.mxu0 %v913
  %v915 = vand.u32 %v664, 4294901760
  %916 = vmatpush.msra.mxu0 %v915
  %v917 = vand.u32 %v663, 4294901760
  %918 = vmatpush.msra.mxu0 %v917
  %v919 = vand.u32 %v662, 4294901760
  %920 = vmatpush.msra.mxu0 %v919
  %v921 = vand.u32 %v661, 4294901760
  %922 = vmatpush.msra.mxu0 %v921
  %v923 = vand.u32 %v660, 4294901760
  %924 = vmatpush.msra.mxu0 %v923
  %v925 = vand.u32 %v263, 4294901760
  %v926 = vsub.f32 %v263, %v925
  %v927 = vand.u32 %v926, 4294901760
  %928 = vmatmul.f32.gmra.mxu0 %v927
  %v929 = vpop.f32.mrf.mxu0
  %v930 = vadd.f32 %v886, %v929
  %v931 = vand.u32 %v264, 4294901760
  %v932 = vsub.f32 %v264, %v931
  %v933 = vand.u32 %v932, 4294901760
  %934 = vmatmul.f32.gmra.mxu0 %v933
  %v935 = vpop.f32.mrf.mxu0
  %v936 = vadd.f32 %v891, %v935
  %937 = vdwg.mxu0
  %v938 = vand.u32 %v675, 4294901760
  %v939 = vsub.f32 %v675, %v938
  %v940 = vand.u32 %v939, 4294901760
  %941 = vmatpush.msra.mxu0 %v940
  %v942 = vand.u32 %v674, 4294901760
  %v943 = vsub.f32 %v674, %v942
  %v944 = vand.u32 %v943, 4294901760
  %945 = vmatpush.msra.mxu0 %v944
  %v946 = vand.u32 %v673, 4294901760
  %v947 = vsub.f32 %v673, %v946
  %v948 = vand.u32 %v947, 4294901760
  %949 = vmatpush.msra.mxu0 %v948
  %v950 = vand.u32 %v672, 4294901760
  %v951 = vsub.f32 %v672, %v950
  %v952 = vand.u32 %v951, 4294901760
  %953 = vmatpush.msra.mxu0 %v952
  %v954 = vand.u32 %v671, 4294901760
  %v955 = vsub.f32 %v671, %v954
  %v956 = vand.u32 %v955, 4294901760
  %957 = vmatpush.msra.mxu0 %v956
  %v958 = vand.u32 %v670, 4294901760
  %v959 = vsub.f32 %v670, %v958
  %v960 = vand.u32 %v959, 4294901760
  %961 = vmatpush.msra.mxu0 %v960
  %v962 = vand.u32 %v669, 4294901760
  %v963 = vsub.f32 %v669, %v962
  %v964 = vand.u32 %v963, 4294901760
  %965 = vmatpush.msra.mxu0 %v964
  %v966 = vand.u32 %v668, 4294901760
  %v967 = vsub.f32 %v668, %v966
  %v968 = vand.u32 %v967, 4294901760
  %969 = vmatpush.msra.mxu0 %v968
  %v970 = vand.u32 %v667, 4294901760
  %v971 = vsub.f32 %v667, %v970
  %v972 = vand.u32 %v971, 4294901760
  %973 = vmatpush.msra.mxu0 %v972
  %v974 = vand.u32 %v666, 4294901760
  %v975 = vsub.f32 %v666, %v974
  %v976 = vand.u32 %v975, 4294901760
  %977 = vmatpush.msra.mxu0 %v976
  %v978 = vand.u32 %v665, 4294901760
  %v979 = vsub.f32 %v665, %v978
  %v980 = vand.u32 %v979, 4294901760
  %981 = vmatpush.msra.mxu0 %v980
  %v982 = vand.u32 %v664, 4294901760
  %v983 = vsub.f32 %v664, %v982
  %v984 = vand.u32 %v983, 4294901760
  %985 = vmatpush.msra.mxu0 %v984
  %v986 = vand.u32 %v663, 4294901760
  %v987 = vsub.f32 %v663, %v986
  %v988 = vand.u32 %v987, 4294901760
  %989 = vmatpush.msra.mxu0 %v988
  %v990 = vand.u32 %v662, 4294901760
  %v991 = vsub.f32 %v662, %v990
  %v992 = vand.u32 %v991, 4294901760
  %993 = vmatpush.msra.mxu0 %v992
  %v994 = vand.u32 %v661, 4294901760
  %v995 = vsub.f32 %v661, %v994
  %v996 = vand.u32 %v995, 4294901760
  %997 = vmatpush.msra.mxu0 %v996
  %v998 = vand.u32 %v660, 4294901760
  %v999 = vsub.f32 %v660, %v998
  %v1000 = vand.u32 %v999, 4294901760
  %1001 = vmatpush.msra.mxu0 %v1000
  %v1002 = vand.u32 %v263, 4294901760
  %1003 = vmatmul.f32.gmra.mxu0 %v1002
  %v1004 = vpop.f32.mrf.mxu0
  %v1005 = vadd.f32 %v930, %v1004
  %v1006 = vand.u32 %v264, 4294901760
  %1007 = vmatmul.f32.gmra.mxu0 %v1006
  %v1008 = vpop.f32.mrf.mxu0
  %v1009 = vadd.f32 %v936, %v1008
  %1010 = vdwg.mxu0
  %v1011 = vand.u32 %v675, 4294901760
  %1012 = vmatpush.msra.mxu0 %v1011
  %v1013 = vand.u32 %v674, 4294901760
  %1014 = vmatpush.msra.mxu0 %v1013
  %v1015 = vand.u32 %v673, 4294901760
  %1016 = vmatpush.msra.mxu0 %v1015
  %v1017 = vand.u32 %v672, 4294901760
  %1018 = vmatpush.msra.mxu0 %v1017
  %v1019 = vand.u32 %v671, 4294901760
  %1020 = vmatpush.msra.mxu0 %v1019
  %v1021 = vand.u32 %v670, 4294901760
  %1022 = vmatpush.msra.mxu0 %v1021
  %v1023 = vand.u32 %v669, 4294901760
  %1024 = vmatpush.msra.mxu0 %v1023
  %v1025 = vand.u32 %v668, 4294901760
  %1026 = vmatpush.msra.mxu0 %v1025
  %v1027 = vand.u32 %v667, 4294901760
  %1028 = vmatpush.msra.mxu0 %v1027
  %v1029 = vand.u32 %v666, 4294901760
  %1030 = vmatpush.msra.mxu0 %v1029
  %v1031 = vand.u32 %v665, 4294901760
  %1032 = vmatpush.msra.mxu0 %v1031
  %v1033 = vand.u32 %v664, 4294901760
  %1034 = vmatpush.msra.mxu0 %v1033
  %v1035 = vand.u32 %v663, 4294901760
  %1036 = vmatpush.msra.mxu0 %v1035
  %v1037 = vand.u32 %v662, 4294901760
  %1038 = vmatpush.msra.mxu0 %v1037
  %v1039 = vand.u32 %v661, 4294901760
  %1040 = vmatpush.msra.mxu0 %v1039
  %v1041 = vand.u32 %v660, 4294901760
  %1042 = vmatpush.msra.mxu0 %v1041
  %v1043 = vand.u32 %v263, 4294901760
  %1044 = vmatmul.f32.gmra.mxu0 %v1043
  %v1045 = vpop.f32.mrf.mxu0
  %v1046 = vadd.f32 %v1005, %v1045
  %v1047 = vand.u32 %v264, 4294901760
  %1048 = vmatmul.f32.gmra.mxu0 %v1047
  %v1049 = vpop.f32.mrf.mxu0
  %v1050 = vadd.f32 %v1009, %v1049
  %1051 = vdwg.mxu0
  %vm1052 = vcmask 7168
  %1053 = vst.msk [vmem:[%s8] sm:$0xff] %vm1052, %v1046
  %1054 = vst.msk [vmem:[%s8 + $0x8] sm:$0xff] %vm1052, %v1050
  // Predicated region
  $region30: #{tpu_custom_call.1} parent=0 // pred_check
    _
  $region31: #{tpu_custom_call.1} parent=0 // pred_check_branch
    %1056 = sbr.rel (0) target = $region33
  $region32: #{tpu_custom_call.1} parent=0 // pred_region
    _
  $region33: #{tpu_custom_call.1} parent=0 // pred_fallthru
    _
  // Predicated region
  $region34: #{tpu_custom_call.1} parent=0 // pred_check
    _
  $region35: #{tpu_custom_call.1} parent=0 // pred_check_branch
    %1058 = sbr.rel (0) target = $region37
  $region36: #{tpu_custom_call.1} parent=0 // pred_region
    _
  $region37: #{tpu_custom_call.1} parent=0 // pred_fallthru
    _
  // Predicated region
  $region38: #{tpu_custom_call.1} parent=0 // pred_check
    _
  $region39: #{tpu_custom_call.1} parent=0 // pred_check_branch
    %1060 = sbr.rel (0) target = $region41
  $region40: #{tpu_custom_call.1} parent=0 // pred_region
    _
  $region41: #{tpu_custom_call.1} parent=0 // pred_fallthru
    _
  // Predicated region
  $region42: #{tpu_custom_call.1} parent=0 // pred_check
    _
  $region43: #{tpu_custom_call.1} parent=0 // pred_check_branch
    %1062 = sbr.rel (0) target = $region45
  $region44: #{tpu_custom_call.1} parent=0 // pred_region
    _
  $region45: #{tpu_custom_call.1} parent=0 // pred_fallthru
    _

</llo_original>
